<compile_context>
chip_gen: v5e
topology: v5e:2x2
jax: 0.10.0
libtpu: 0.0.40
codegen_flags: <defaults>
</compile_context>

<pallas_src>
import math

import jax
import jax.numpy as jnp
from jax.experimental import pallas as pl
from jax.experimental.pallas import tpu as pltpu

EPS = 1e-5   # torch.nn.LayerNorm default eps
LANE = 128   # TPU vreg lane width


# ---------------------------------------------------------------- kernel math
def _gelu(x):
    # exact (erf) GELU, matching torch.nn.GELU(approximate='none') default
    return 0.5 * x * (1.0 + jax.lax.erf(x * (1.0 / math.sqrt(2.0))))


def _layernorm(y, gamma, beta):
    mean = jnp.mean(y, axis=-1, keepdims=True)
    var = jnp.mean((y - mean) ** 2, axis=-1, keepdims=True)
    return (y - mean) * jax.lax.rsqrt(var + EPS) * gamma + beta


# ------------------------------------------------------------- fused kernel
def _make_fused_kernel(descs):
    """Build a kernel that chains the whole MLP in one body.

    descs: static tuple of stage descriptors
      ('proj', out_d)  hidden layer, residual branch is a projection.
                       weight ref is [W | Rw] (in, 2*out_d),
                       packed ref rows: row0 = [b | rb], row1 = [gamma | beta]
      ('id',   out_d)  hidden layer, residual branch is Identity.
                       weight ref is W (in, out_d),
                       packed ref rows: row0 = b, row1 = gamma, row2 = beta
      ('out',)         output projection (lane-padded).
                       weight ref is W_pad (in, out_pad),
                       packed ref row0 = b_pad
    """
    def kernel(*refs):
        o_ref = refs[-1]
        x = refs[0][...].astype(jnp.float32)
        idx = 1
        for d in descs:
            kind = d[0]
            w = refs[idx][...]
            p = refs[idx + 1][...]
            idx += 2
            if kind == "proj":
                out_d = d[1]
                # one MXU matmul computes main + residual branches together
                h = jnp.dot(x, w, preferred_element_type=jnp.float32) + p[0:1, :]
                y = _gelu(h[:, :out_d])
                y = _layernorm(y, p[1:2, :out_d], p[1:2, out_d:2 * out_d])
                x = h[:, out_d:2 * out_d] + y
            elif kind == "id":
                y = jnp.dot(x, w, preferred_element_type=jnp.float32) + p[0:1, :]
                y = _gelu(y)
                y = _layernorm(y, p[1:2, :], p[2:3, :])
                x = x + y
            else:  # 'out'
                x = jnp.dot(x, w, preferred_element_type=jnp.float32) + p[0:1, :]
        o_ref[...] = x.astype(o_ref.dtype)

    return kernel


# -------------------------------------------------------------- param packing
def _pack_fused(params, dtype=jnp.float32):
    """Natural params -> (descs, flat input list, out_dim, out_dim_padded)."""
    def pad_rows(a, rows=8):
        return jnp.pad(a, ((0, rows - a.shape[0]), (0, 0)))

    descs, inputs = [], []
    last_dim = None
    for layer in params["layers"]:
        w, b = layer["w"], layer["b"]
        gamma, beta = layer["gamma"], layer["beta"]
        out_d = w.shape[1]
        if layer["rw"] is not None:
            # concat main + residual-projection weights -> single MXU matmul
            wcat = jnp.concatenate([w, layer["rw"]], axis=1)            # (in, 2*out)
            row0 = jnp.concatenate([b, layer["rb"]], axis=1)            # (1, 2*out)
            row1 = jnp.concatenate([gamma, beta], axis=1)               # (1, 2*out)
            pvec = pad_rows(jnp.concatenate([row0, row1], axis=0))      # (8, 2*out)
            descs.append(("proj", out_d))
            inputs += [wcat.astype(dtype), pvec.astype(dtype)]
        else:
            pvec = pad_rows(jnp.concatenate([b, gamma, beta], axis=0))  # (8, out)
            descs.append(("id", out_d))
            inputs += [w.astype(dtype), pvec.astype(dtype)]
        last_dim = out_d

    if params["out"] is not None:
        w, b = params["out"]
        out_dim = w.shape[1]
        out_pad = pl.cdiv(out_dim, LANE) * LANE   # lane-dense output store
        wpad = jnp.pad(w, ((0, 0), (0, out_pad - out_dim)))
        bpad = pad_rows(jnp.pad(b, ((0, 0), (0, out_pad - out_dim))))
        descs.append(("out",))
        inputs += [wpad.astype(dtype), bpad.astype(dtype)]
    else:
        out_dim = last_dim
        out_pad = last_dim

    return tuple(descs), inputs, out_dim, out_pad


def _pick_tile_b(batch):
    for t in (512, 256, 128, 64, 32, 16, 8):
        if batch >= t and batch % t == 0:
            return t
    return batch  # tiny / odd batch: single full-array block


# ----------------------------------------------------------------- entry point
def mlp_forward(params, x):
    """Pallas implementation of MLP.forward — one fused pallas_call."""
    descs, w_inputs, out_dim, out_pad = _pack_fused(params, dtype=x.dtype)
    batch, in_dim = x.shape
    tile_b = _pick_tile_b(batch)
    grid = (batch // tile_b,)

    in_specs = [pl.BlockSpec((tile_b, in_dim), lambda i: (i, 0))]
    for arr in w_inputs:
        # weights / packed vectors: same full-array block for every grid step
        in_specs.append(pl.BlockSpec(arr.shape, lambda i: (0, 0)))

    out = pl.pallas_call(
        _make_fused_kernel(descs),
        out_shape=jax.ShapeDtypeStruct((batch, out_pad), x.dtype),
        grid=grid,
        in_specs=in_specs,
        out_specs=pl.BlockSpec((tile_b, out_pad), lambda i: (i, 0)),
        compiler_params=pltpu.CompilerParams(
            dimension_semantics=("parallel",)),
    )(x, *w_inputs)

    return out[:, :out_dim] if out_pad != out_dim else out


# ------------------------------------------------------------ reference (JAX)
def mlp_forward_ref(params, x):
    for layer in params["layers"]:
        y = _gelu(x @ layer["w"] + layer["b"])
        y = _layernorm(y, layer["gamma"], layer["beta"])
        r = x if layer["rw"] is None else x @ layer["rw"] + layer["rb"]
        x = r + y
    if params["out"] is not None:
        w, b = params["out"]
        x = x @ w + b
    return x


# -------------------------------------------------------------- param builder
def init_params(key, input_dim, hidden_dim, output_dim, num_hidden_layers,
                use_layer_norm=True, use_resid=True):
    assert num_hidden_layers >= 1

    def linear(key, in_d, out_d):
        kw, kb = jax.random.split(key)
        bound = 1.0 / math.sqrt(in_d)
        w = jax.random.uniform(kw, (in_d, out_d), jnp.float32, -bound, bound)
        b = jax.random.uniform(kb, (1, out_d), jnp.float32, -bound, bound)
        return w, b

    layers = []
    dims = [(input_dim, hidden_dim)] + [(hidden_dim, hidden_dim)] * (num_hidden_layers - 1)
    for (in_d, out_d) in dims:
        key, k1, k2 = jax.random.split(key, 3)
        w, b = linear(k1, in_d, out_d)
        gamma = jnp.ones((1, out_d), jnp.float32)
        beta = jnp.zeros((1, out_d), jnp.float32)
        if use_resid and in_d != out_d:
            rw, rb = linear(k2, in_d, out_d)
        else:
            rw, rb = None, None
        assert use_layer_norm  # this script instantiates the LN+resid variant
        layers.append(dict(w=w, b=b, gamma=gamma, beta=beta, rw=rw, rb=rb))

    out = None
    if output_dim is not None:
        key, ko = jax.random.split(key)
        out = linear(ko, hidden_dim, output_dim)
    return dict(layers=layers, out=out)


# --------------------------------------------------------------------- driver
if __name__ == "__main__":
    INPUT_DIM, HIDDEN_DIM, OUTPUT_DIM, NUM_HIDDEN_LAYERS = 32, 64, 16, 2
    BATCH = 8

    key = jax.random.PRNGKey(0)
    k_params, k_x = jax.random.split(key)
    params = init_params(k_params, INPUT_DIM, HIDDEN_DIM, OUTPUT_DIM, NUM_HIDDEN_LAYERS)
    x = jax.random.normal(k_x, (BATCH, INPUT_DIM), jnp.float32)

    out = mlp_forward(params, x)
    out = jax.block_until_ready(out)

    ref = mlp_forward_ref(params, x)
    assert out.shape == (BATCH, OUTPUT_DIM), out.shape
    assert jnp.allclose(out, ref, atol=5e-5, rtol=5e-5), float(jnp.abs(out - ref).max())

    # TODO(synk): dropout>0 (train-mode stochastic masking) not implemented;
    # the reference config uses dropout=0.0 where the module itself skips it.
    print("KERNEL_OK")
</pallas_src>

<mosaic_0001>
module attributes {stable_mosaic.version = 11 : i64} {
  func.func @kernel(%arg0: i32, %arg1: memref<8x32xf32, #tpu.memory_space<vmem>>, %arg2: memref<32x128xf32, #tpu.memory_space<vmem>>, %arg3: memref<8x128xf32, #tpu.memory_space<vmem>>, %arg4: memref<64x64xf32, #tpu.memory_space<vmem>>, %arg5: memref<8x64xf32, #tpu.memory_space<vmem>>, %arg6: memref<64x128xf32, #tpu.memory_space<vmem>>, %arg7: memref<8x128xf32, #tpu.memory_space<vmem>>, %arg8: memref<8x128xf32, #tpu.memory_space<vmem>>) attributes {dimension_semantics = [#tpu.dimension_semantics<parallel>], iteration_bounds = array<i64: 1>, scalar_prefetch = 0 : i64, scratch_operands = 0 : i64, tpu.core_type = #tpu.core_type<tc>, window_params = [{transform_indices = @transform_0, window_bounds = array<i64: 8, 32>}, {pipeline_mode = #tpu.pipeline_mode<synchronous>, transform_indices = @transform_1, window_bounds = array<i64: 32, 128>}, {pipeline_mode = #tpu.pipeline_mode<synchronous>, transform_indices = @transform_2, window_bounds = array<i64: 8, 128>}, {pipeline_mode = #tpu.pipeline_mode<synchronous>, transform_indices = @transform_3, window_bounds = array<i64: 64, 64>}, {pipeline_mode = #tpu.pipeline_mode<synchronous>, transform_indices = @transform_4, window_bounds = array<i64: 8, 64>}, {pipeline_mode = #tpu.pipeline_mode<synchronous>, transform_indices = @transform_5, window_bounds = array<i64: 64, 128>}, {pipeline_mode = #tpu.pipeline_mode<synchronous>, transform_indices = @transform_6, window_bounds = array<i64: 8, 128>}, {transform_indices = @transform_7, window_bounds = array<i64: 8, 128>}]} {
    %c0 = arith.constant 0 : index
    %c0_0 = arith.constant 0 : index
    %0 = vector.load %arg1[%c0, %c0_0] : memref<8x32xf32, #tpu.memory_space<vmem>>, vector<8x32xf32>
    %c0_1 = arith.constant 0 : index
    %c0_2 = arith.constant 0 : index
    %1 = vector.load %arg2[%c0_1, %c0_2] : memref<32x128xf32, #tpu.memory_space<vmem>>, vector<32x128xf32>
    %c0_3 = arith.constant 0 : index
    %c0_4 = arith.constant 0 : index
    %2 = vector.load %arg3[%c0_3, %c0_4] : memref<8x128xf32, #tpu.memory_space<vmem>>, vector<8x128xf32>
    %cst = arith.constant dense<0.000000e+00> : vector<8x128xf32>
    %3 = tpu.matmul %0, %1, %cst {dimension_numbers = #tpu.dot_dimension_numbers<[1], [0], [0], [1], [0, 0, 1, 1], [], []>} : vector<8x32xf32>, vector<32x128xf32>, vector<8x128xf32> -> vector<8x128xf32>
    %4 = vector.extract_strided_slice %2 {offsets = [0, 0], sizes = [1, 128], strides = [1, 1]} : vector<8x128xf32> to vector<1x128xf32>
    %5 = vector.broadcast %4 : vector<1x128xf32> to vector<8x128xf32>
    %6 = arith.addf %3, %5 : vector<8x128xf32>
    %7 = vector.extract_strided_slice %6 {offsets = [0, 0], sizes = [8, 64], strides = [1, 1]} : vector<8x128xf32> to vector<8x64xf32>
    %cst_5 = arith.constant 5.000000e-01 : f32
    %8 = vector.broadcast %cst_5 : f32 to vector<8x64xf32>
    %9 = arith.mulf %8, %7 : vector<8x64xf32>
    %cst_6 = arith.constant 0.707106769 : f32
    %10 = vector.broadcast %cst_6 : f32 to vector<8x64xf32>
    %11 = arith.mulf %7, %10 : vector<8x64xf32>
    %12 = math.erf %11 : vector<8x64xf32>
    %cst_7 = arith.constant 1.000000e+00 : f32
    %13 = vector.broadcast %cst_7 : f32 to vector<8x64xf32>
    %14 = arith.addf %13, %12 : vector<8x64xf32>
    %15 = arith.mulf %9, %14 : vector<8x64xf32>
    %16 = vector.extract_strided_slice %2 {offsets = [1, 0], sizes = [1, 64], strides = [1, 1]} : vector<8x128xf32> to vector<1x64xf32>
    %17 = vector.extract_strided_slice %2 {offsets = [1, 64], sizes = [1, 64], strides = [1, 1]} : vector<8x128xf32> to vector<1x64xf32>
    %cst_8 = arith.constant dense<0.000000e+00> : vector<8xf32>
    %18 = vector.multi_reduction <add>, %15, %cst_8 [1] : vector<8x64xf32> to vector<8xf32>
    %19 = vector.shape_cast %18 : vector<8xf32> to vector<8x1xf32>
    %cst_9 = arith.constant 6.400000e+01 : f32
    %20 = vector.broadcast %cst_9 : f32 to vector<8x1xf32>
    %21 = arith.divf %19, %20 : vector<8x1xf32>
    %22 = vector.broadcast %21 : vector<8x1xf32> to vector<8x64xf32>
    %23 = arith.subf %15, %22 : vector<8x64xf32>
    %24 = arith.mulf %23, %23 : vector<8x64xf32>
    %cst_10 = arith.constant dense<0.000000e+00> : vector<8xf32>
    %25 = vector.multi_reduction <add>, %24, %cst_10 [1] : vector<8x64xf32> to vector<8xf32>
    %26 = vector.shape_cast %25 : vector<8xf32> to vector<8x1xf32>
    %cst_11 = arith.constant 6.400000e+01 : f32
    %27 = vector.broadcast %cst_11 : f32 to vector<8x1xf32>
    %28 = arith.divf %26, %27 : vector<8x1xf32>
    %29 = vector.broadcast %21 : vector<8x1xf32> to vector<8x64xf32>
    %30 = arith.subf %15, %29 : vector<8x64xf32>
    %cst_12 = arith.constant 9.99999974E-6 : f32
    %31 = vector.broadcast %cst_12 : f32 to vector<8x1xf32>
    %32 = arith.addf %28, %31 : vector<8x1xf32>
    %33 = math.rsqrt %32 : vector<8x1xf32>
    %34 = vector.broadcast %33 : vector<8x1xf32> to vector<8x64xf32>
    %35 = arith.mulf %30, %34 : vector<8x64xf32>
    %36 = vector.broadcast %16 : vector<1x64xf32> to vector<8x64xf32>
    %37 = arith.mulf %35, %36 : vector<8x64xf32>
    %38 = vector.broadcast %17 : vector<1x64xf32> to vector<8x64xf32>
    %39 = arith.addf %37, %38 : vector<8x64xf32>
    %40 = vector.extract_strided_slice %6 {offsets = [0, 64], sizes = [8, 64], strides = [1, 1]} : vector<8x128xf32> to vector<8x64xf32>
    %41 = arith.addf %40, %39 : vector<8x64xf32>
    %c0_13 = arith.constant 0 : index
    %c0_14 = arith.constant 0 : index
    %42 = vector.load %arg4[%c0_13, %c0_14] : memref<64x64xf32, #tpu.memory_space<vmem>>, vector<64x64xf32>
    %c0_15 = arith.constant 0 : index
    %c0_16 = arith.constant 0 : index
    %43 = vector.load %arg5[%c0_15, %c0_16] : memref<8x64xf32, #tpu.memory_space<vmem>>, vector<8x64xf32>
    %cst_17 = arith.constant dense<0.000000e+00> : vector<8x64xf32>
    %44 = tpu.matmul %41, %42, %cst_17 {dimension_numbers = #tpu.dot_dimension_numbers<[1], [0], [0], [1], [0, 0, 1, 1], [], []>} : vector<8x64xf32>, vector<64x64xf32>, vector<8x64xf32> -> vector<8x64xf32>
    %45 = vector.extract_strided_slice %43 {offsets = [0, 0], sizes = [1, 64], strides = [1, 1]} : vector<8x64xf32> to vector<1x64xf32>
    %46 = vector.broadcast %45 : vector<1x64xf32> to vector<8x64xf32>
    %47 = arith.addf %44, %46 : vector<8x64xf32>
    %cst_18 = arith.constant 5.000000e-01 : f32
    %48 = vector.broadcast %cst_18 : f32 to vector<8x64xf32>
    %49 = arith.mulf %48, %47 : vector<8x64xf32>
    %cst_19 = arith.constant 0.707106769 : f32
    %50 = vector.broadcast %cst_19 : f32 to vector<8x64xf32>
    %51 = arith.mulf %47, %50 : vector<8x64xf32>
    %52 = math.erf %51 : vector<8x64xf32>
    %cst_20 = arith.constant 1.000000e+00 : f32
    %53 = vector.broadcast %cst_20 : f32 to vector<8x64xf32>
    %54 = arith.addf %53, %52 : vector<8x64xf32>
    %55 = arith.mulf %49, %54 : vector<8x64xf32>
    %56 = vector.extract_strided_slice %43 {offsets = [1, 0], sizes = [1, 64], strides = [1, 1]} : vector<8x64xf32> to vector<1x64xf32>
    %57 = vector.extract_strided_slice %43 {offsets = [2, 0], sizes = [1, 64], strides = [1, 1]} : vector<8x64xf32> to vector<1x64xf32>
    %cst_21 = arith.constant dense<0.000000e+00> : vector<8xf32>
    %58 = vector.multi_reduction <add>, %55, %cst_21 [1] : vector<8x64xf32> to vector<8xf32>
    %59 = vector.shape_cast %58 : vector<8xf32> to vector<8x1xf32>
    %cst_22 = arith.constant 6.400000e+01 : f32
    %60 = vector.broadcast %cst_22 : f32 to vector<8x1xf32>
    %61 = arith.divf %59, %60 : vector<8x1xf32>
    %62 = vector.broadcast %61 : vector<8x1xf32> to vector<8x64xf32>
    %63 = arith.subf %55, %62 : vector<8x64xf32>
    %64 = arith.mulf %63, %63 : vector<8x64xf32>
    %cst_23 = arith.constant dense<0.000000e+00> : vector<8xf32>
    %65 = vector.multi_reduction <add>, %64, %cst_23 [1] : vector<8x64xf32> to vector<8xf32>
    %66 = vector.shape_cast %65 : vector<8xf32> to vector<8x1xf32>
    %cst_24 = arith.constant 6.400000e+01 : f32
    %67 = vector.broadcast %cst_24 : f32 to vector<8x1xf32>
    %68 = arith.divf %66, %67 : vector<8x1xf32>
    %69 = vector.broadcast %61 : vector<8x1xf32> to vector<8x64xf32>
    %70 = arith.subf %55, %69 : vector<8x64xf32>
    %cst_25 = arith.constant 9.99999974E-6 : f32
    %71 = vector.broadcast %cst_25 : f32 to vector<8x1xf32>
    %72 = arith.addf %68, %71 : vector<8x1xf32>
    %73 = math.rsqrt %72 : vector<8x1xf32>
    %74 = vector.broadcast %73 : vector<8x1xf32> to vector<8x64xf32>
    %75 = arith.mulf %70, %74 : vector<8x64xf32>
    %76 = vector.broadcast %56 : vector<1x64xf32> to vector<8x64xf32>
    %77 = arith.mulf %75, %76 : vector<8x64xf32>
    %78 = vector.broadcast %57 : vector<1x64xf32> to vector<8x64xf32>
    %79 = arith.addf %77, %78 : vector<8x64xf32>
    %80 = arith.addf %41, %79 : vector<8x64xf32>
    %c0_26 = arith.constant 0 : index
    %c0_27 = arith.constant 0 : index
    %81 = vector.load %arg6[%c0_26, %c0_27] : memref<64x128xf32, #tpu.memory_space<vmem>>, vector<64x128xf32>
    %c0_28 = arith.constant 0 : index
    %c0_29 = arith.constant 0 : index
    %82 = vector.load %arg7[%c0_28, %c0_29] : memref<8x128xf32, #tpu.memory_space<vmem>>, vector<8x128xf32>
    %cst_30 = arith.constant dense<0.000000e+00> : vector<8x128xf32>
    %83 = tpu.matmul %80, %81, %cst_30 {dimension_numbers = #tpu.dot_dimension_numbers<[1], [0], [0], [1], [0, 0, 1, 1], [], []>} : vector<8x64xf32>, vector<64x128xf32>, vector<8x128xf32> -> vector<8x128xf32>
    %84 = vector.extract_strided_slice %82 {offsets = [0, 0], sizes = [1, 128], strides = [1, 1]} : vector<8x128xf32> to vector<1x128xf32>
    %85 = vector.broadcast %84 : vector<1x128xf32> to vector<8x128xf32>
    %86 = arith.addf %83, %85 : vector<8x128xf32>
    %c0_31 = arith.constant 0 : index
    %c0_32 = arith.constant 0 : index
    %87 = vector.load %arg8[%c0_31, %c0_32] : memref<8x128xf32, #tpu.memory_space<vmem>>, vector<8x128xf32>
    tpu.vector_store %arg8[%c0_31, %c0_32], %86 {strides = array<i32>} : memref<8x128xf32, #tpu.memory_space<vmem>>, vector<8x128xf32>,
    return
  }
  func.func @transform_0(%arg0: i32) -> (i32, i32) {
    %c0_i32 = arith.constant 0 : i32
    %c0_i32_0 = arith.constant 0 : i32
    return %arg0, %c0_i32 : i32, i32
  }
  func.func @transform_1(%arg0: i32) -> (i32, i32) {
    %c0_i32 = arith.constant 0 : i32
    %c0_i32_0 = arith.constant 0 : i32
    %c0_i32_1 = arith.constant 0 : i32
    return %c0_i32, %c0_i32_0 : i32, i32
  }
  func.func @transform_2(%arg0: i32) -> (i32, i32) {
    %c0_i32 = arith.constant 0 : i32
    %c0_i32_0 = arith.constant 0 : i32
    %c0_i32_1 = arith.constant 0 : i32
    return %c0_i32, %c0_i32_0 : i32, i32
  }
  func.func @transform_3(%arg0: i32) -> (i32, i32) {
    %c0_i32 = arith.constant 0 : i32
    %c0_i32_0 = arith.constant 0 : i32
    %c0_i32_1 = arith.constant 0 : i32
    return %c0_i32, %c0_i32_0 : i32, i32
  }
  func.func @transform_4(%arg0: i32) -> (i32, i32) {
    %c0_i32 = arith.constant 0 : i32
    %c0_i32_0 = arith.constant 0 : i32
    %c0_i32_1 = arith.constant 0 : i32
    return %c0_i32, %c0_i32_0 : i32, i32
  }
  func.func @transform_5(%arg0: i32) -> (i32, i32) {
    %c0_i32 = arith.constant 0 : i32
    %c0_i32_0 = arith.constant 0 : i32
    %c0_i32_1 = arith.constant 0 : i32
    return %c0_i32, %c0_i32_0 : i32, i32
  }
  func.func @transform_6(%arg0: i32) -> (i32, i32) {
    %c0_i32 = arith.constant 0 : i32
    %c0_i32_0 = arith.constant 0 : i32
    %c0_i32_1 = arith.constant 0 : i32
    return %c0_i32, %c0_i32_0 : i32, i32
  }
  func.func @transform_7(%arg0: i32) -> (i32, i32) {
    %c0_i32 = arith.constant 0 : i32
    %c0_i32_0 = arith.constant 0 : i32
    return %arg0, %c0_i32 : i32, i32
  }
}

</mosaic_0001>

<llo_original>
// kernel: tpu_custom_call.1
$region0: #{tpu_custom_call.1}
  #allocation0 [shape = 'u32[]', space=smem, size = 0x4, offset = 0x4, fixed_abs, tag = 'smem constant byte address 0x4 - core index']
  #allocation1 [shape = 'u32[72,128]{1,0:T(1,128)}', space=vmem, size = 0x9000, scoped, tag = 'internal scratch']
  %s0 = inlined_call_operand.hbm [shape: f32[8,32], index: 0, kind: input, shape index: {}]
  %s1 = inlined_call_operand.hbm [shape: f32[32,128], index: 1, kind: input, shape index: {}]
  %s2 = inlined_call_operand.hbm [shape: f32[8,128], index: 2, kind: input, shape index: {}]
  %s3 = inlined_call_operand.hbm [shape: f32[64,64], index: 3, kind: input, shape index: {}]
  %s4 = inlined_call_operand.hbm [shape: f32[8,64], index: 4, kind: input, shape index: {}]
  %s5 = inlined_call_operand.hbm [shape: f32[64,128], index: 5, kind: input, shape index: {}]
  %s6 = inlined_call_operand.hbm [shape: f32[8,128], index: 6, kind: input, shape index: {}]
  %s7 = inlined_call_operand.hbm [shape: f32[8,128], index: 7, kind: output, shape index: {}]
  %s8 = sld [smem:[#allocation0]]
  $region66: #{tpu_custom_call.1} parent=0
    _
  %s10 = ssub.s32 1, %s8
  %s11 = scalar_select 0, %s10, %s8
  $region1: #{tpu_custom_call.1} parent=0
    #allocation2 [shape = 'u8[4096]{0}', space=vmem, size = 0x1000, scoped, tag = 'input window, operand 0, single buffered']
    #allocation3 [shape = 's32[1]{0}', space=sflag, size = 0x4, scoped, tag = 'scoped memory for tpu_custom_call.1']
    #allocation4 [shape = 's32[1]{0}', space=sflag, size = 0x4, scoped, tag = 'scoped memory for tpu_custom_call.1']
    #allocation5 [shape = 'u8[16384]{0}', space=vmem, size = 0x4000, scoped, tag = 'input window, operand 1, single buffered']
    #allocation6 [shape = 's32[1]{0}', space=sflag, size = 0x4, scoped, tag = 'scoped memory for tpu_custom_call.1']
    #allocation7 [shape = 'u8[4096]{0}', space=vmem, size = 0x1000, scoped, tag = 'input window, operand 2, single buffered']
    #allocation8 [shape = 'u8[32768]{0}', space=vmem, size = 0x8000, scoped, tag = 'input window, operand 3, single buffered']
    #allocation9 [shape = 's32[1]{0}', space=sflag, size = 0x4, scoped, tag = 'scoped memory for tpu_custom_call.1']
    #allocation10 [shape = 'u8[4096]{0}', space=vmem, size = 0x1000, scoped, tag = 'input window, operand 4, single buffered']
    #allocation11 [shape = 'u8[32768]{0}', space=vmem, size = 0x8000, scoped, tag = 'input window, operand 5, single buffered']
    #allocation12 [shape = 's32[1]{0}', space=sflag, size = 0x4, scoped, tag = 'scoped memory for tpu_custom_call.1']
    #allocation13 [shape = 'u8[4096]{0}', space=vmem, size = 0x1000, scoped, tag = 'input window, operand 6, single buffered']
    #allocation14 [shape = 'u8[4096]{0}', space=vmem, size = 0x1000, scoped, tag = 'output window, operand 0, single buffered']
    %12 = vsyncpa [#allocation3], 0
    %13 = vsyncpa [#allocation6], 0
    %14 = vsyncpa [#allocation9], 0
    %15 = vsyncpa [#allocation12], 0
    %16 = vsyncpa [#allocation4], 0
    // Predicated region
    $region2: #{tpu_custom_call.1} parent=1 // pred_check
      _
    $region3: #{tpu_custom_call.1} parent=1 // pred_check_branch
      %18 = sbr.rel (0) target = $region5
    $region4: #{tpu_custom_call.1} parent=1 // pred_region
      %20 = vsyncadd [#allocation3], 0
      %s22 = sshll.u32 %s0, 4
      %s23 = int_to_ptr.hbm [resolvable:$true] %s22
      %s24 = sshll.u32 [#allocation2], 4
      %s25 = int_to_ptr.vmem [resolvable:$true] %s24
      %27 = dma.hbm_to_vmem [thread:$0]  %s23, 128, %s25, [#allocation3]
    $region5: #{tpu_custom_call.1} parent=1 // pred_fallthru
      _
    // Predicated region
    $region6: #{tpu_custom_call.1} parent=1 // pred_check
      _
    $region7: #{tpu_custom_call.1} parent=1 // pred_check_branch
      %29 = sbr.rel (0) target = $region9
    $region8: #{tpu_custom_call.1} parent=1 // pred_region
      %31 = vsyncadd [#allocation6], 0
      %s32 = sshll.u32 %s1, 4
      %s33 = int_to_ptr.hbm [resolvable:$true] %s32
      %s34 = sshll.u32 [#allocation5], 4
      %s35 = int_to_ptr.vmem [resolvable:$true] %s34
      %40 = dma.hbm_to_vmem [thread:$0]  %s33, 512, %s35, [#allocation6], 128, 128, 8
    $region9: #{tpu_custom_call.1} parent=1 // pred_fallthru
      _
    // Predicated region
    $region10: #{tpu_custom_call.1} parent=1 // pred_check
      _
    $region11: #{tpu_custom_call.1} parent=1 // pred_check_branch
      %42 = sbr.rel (0) target = $region13
    $region12: #{tpu_custom_call.1} parent=1 // pred_region
      %44 = vsyncadd [#allocation6], 0
      %s46 = sshll.u32 %s2, 4
      %s47 = int_to_ptr.hbm [resolvable:$true] %s46
      %s48 = sshll.u32 [#allocation7], 4
      %s49 = int_to_ptr.vmem [resolvable:$true] %s48
      %51 = dma.hbm_to_vmem [thread:$0]  %s47, 128, %s49, [#allocation6]
    $region13: #{tpu_custom_call.1} parent=1 // pred_fallthru
      _
    // Predicated region
    $region14: #{tpu_custom_call.1} parent=1 // pred_check
      _
    $region15: #{tpu_custom_call.1} parent=1 // pred_check_branch
      %53 = sbr.rel (0) target = $region17
    $region16: #{tpu_custom_call.1} parent=1 // pred_region
      %55 = vsyncadd [#allocation9], 0
      %s56 = sshll.u32 %s3, 4
      %s57 = int_to_ptr.hbm [resolvable:$true] %s56
      %s58 = sshll.u32 [#allocation8], 4
      %s59 = int_to_ptr.vmem [resolvable:$true] %s58
      %64 = dma.hbm_to_vmem [thread:$0]  %s57, 1024, %s59, [#allocation9], 128, 128, 8
    $region17: #{tpu_custom_call.1} parent=1 // pred_fallthru
      _
    // Predicated region
    $region18: #{tpu_custom_call.1} parent=1 // pred_check
      _
    $region19: #{tpu_custom_call.1} parent=1 // pred_check_branch
      %66 = sbr.rel (0) target = $region21
    $region20: #{tpu_custom_call.1} parent=1 // pred_region
      %68 = vsyncadd [#allocation9], 0
      %s70 = sshll.u32 %s4, 4
      %s71 = int_to_ptr.hbm [resolvable:$true] %s70
      %s72 = sshll.u32 [#allocation10], 4
      %s73 = int_to_ptr.vmem [resolvable:$true] %s72
      %75 = dma.hbm_to_vmem [thread:$0]  %s71, 128, %s73, [#allocation9]
    $region21: #{tpu_custom_call.1} parent=1 // pred_fallthru
      _
    // Predicated region
    $region22: #{tpu_custom_call.1} parent=1 // pred_check
      _
    $region23: #{tpu_custom_call.1} parent=1 // pred_check_branch
      %77 = sbr.rel (0) target = $region25
    $region24: #{tpu_custom_call.1} parent=1 // pred_region
      %79 = vsyncadd [#allocation12], 0
      %s80 = sshll.u32 %s5, 4
      %s81 = int_to_ptr.hbm [resolvable:$true] %s80
      %s82 = sshll.u32 [#allocation11], 4
      %s83 = int_to_ptr.vmem [resolvable:$true] %s82
      %88 = dma.hbm_to_vmem [thread:$0]  %s81, 1024, %s83, [#allocation12], 128, 128, 8
    $region25: #{tpu_custom_call.1} parent=1 // pred_fallthru
      _
    // Predicated region
    $region26: #{tpu_custom_call.1} parent=1 // pred_check
      _
    $region27: #{tpu_custom_call.1} parent=1 // pred_check_branch
      %90 = sbr.rel (0) target = $region29
    $region28: #{tpu_custom_call.1} parent=1 // pred_region
      %92 = vsyncadd [#allocation12], 0
      %s94 = sshll.u32 %s6, 4
      %s95 = int_to_ptr.hbm [resolvable:$true] %s94
      %s96 = sshll.u32 [#allocation13], 4
      %s97 = int_to_ptr.vmem [resolvable:$true] %s96
      %99 = dma.hbm_to_vmem [thread:$0]  %s95, 128, %s97, [#allocation12]
    $region29: #{tpu_custom_call.1} parent=1 // pred_fallthru
      _
    // Predicated region
    $region30: #{tpu_custom_call.1} parent=1 // pred_check
      _
    $region31: #{tpu_custom_call.1} parent=1 // pred_check_branch
      %101 = sbr.rel (0) target = $region33
    $region32: #{tpu_custom_call.1} parent=1 // pred_region
      %103 = dma.done [#allocation3], 128
    $region33: #{tpu_custom_call.1} parent=1 // pred_fallthru
      _
    // Predicated region
    $region34: #{tpu_custom_call.1} parent=1 // pred_check
      _
    $region35: #{tpu_custom_call.1} parent=1 // pred_check_branch
      %105 = sbr.rel (0) target = $region37
    $region36: #{tpu_custom_call.1} parent=1 // pred_region
      %107 = dma.done [#allocation6], 512
    $region37: #{tpu_custom_call.1} parent=1 // pred_fallthru
      _
    // Predicated region
    $region38: #{tpu_custom_call.1} parent=1 // pred_check
      _
    $region39: #{tpu_custom_call.1} parent=1 // pred_check_branch
      %109 = sbr.rel (0) target = $region41
    $region40: #{tpu_custom_call.1} parent=1 // pred_region
      %111 = dma.done [#allocation6], 128
    $region41: #{tpu_custom_call.1} parent=1 // pred_fallthru
      _
    // Predicated region
    $region42: #{tpu_custom_call.1} parent=1 // pred_check
      _
    $region43: #{tpu_custom_call.1} parent=1 // pred_check_branch
      %113 = sbr.rel (0) target = $region45
    $region44: #{tpu_custom_call.1} parent=1 // pred_region
      %115 = dma.done [#allocation9], 1024
    $region45: #{tpu_custom_call.1} parent=1 // pred_fallthru
      _
    // Predicated region
    $region46: #{tpu_custom_call.1} parent=1 // pred_check
      _
    $region47: #{tpu_custom_call.1} parent=1 // pred_check_branch
      %117 = sbr.rel (0) target = $region49
    $region48: #{tpu_custom_call.1} parent=1 // pred_region
      %119 = dma.done [#allocation9], 128
    $region49: #{tpu_custom_call.1} parent=1 // pred_fallthru
      _
    // Predicated region
    $region50: #{tpu_custom_call.1} parent=1 // pred_check
      _
    $region51: #{tpu_custom_call.1} parent=1 // pred_check_branch
      %121 = sbr.rel (0) target = $region53
    $region52: #{tpu_custom_call.1} parent=1 // pred_region
      %123 = dma.done [#allocation12], 1024
    $region53: #{tpu_custom_call.1} parent=1 // pred_fallthru
      _
    // Predicated region
    $region54: #{tpu_custom_call.1} parent=1 // pred_check
      _
    $region55: #{tpu_custom_call.1} parent=1 // pred_check_branch
      %125 = sbr.rel (0) target = $region57
    $region56: #{tpu_custom_call.1} parent=1 // pred_region
      %127 = dma.done [#allocation12], 128
    $region57: #{tpu_custom_call.1} parent=1 // pred_fallthru
      _
    %v128 = vld [vmem:[#allocation2] sm:$0xff]
    %v129 = vld [vmem:[#allocation5] sm:$0xff]
    %v130 = vld [vmem:[#allocation5 + $0x8] sm:$0xff]
    %v131 = vld [vmem:[#allocation5 + $0x10] sm:$0xff]
    %v132 = vld [vmem:[#allocation5 + $0x18] sm:$0xff]
    %v133 = vld [vmem:[#allocation7] sm:$0xff]
    %v134 = vperm.slane %v133, 0
    %vm135 = vcmask 261120
    %v137 = vsel %vm135, %v128, 0
    %139 = vmatpush.msra.mxu0 0.0
    %140 = vmatpush.msra.mxu0 0.0
    %141 = vmatpush.msra.mxu0 0.0
    %142 = vmatpush.msra.mxu0 0.0
    %143 = vmatpush.msra.mxu0 0.0
    %144 = vmatpush.msra.mxu0 0.0
    %145 = vmatpush.msra.mxu0 0.0
    %146 = vmatpush.msra.mxu0 0.0
    %147 = vmatpush.msra.mxu0 0.0
    %148 = vmatpush.msra.mxu0 0.0
    %149 = vmatpush.msra.mxu0 0.0
    %150 = vmatpush.msra.mxu0 0.0
    %151 = vmatpush.msra.mxu0 %v132
    %152 = vmatpush.msra.mxu0 %v131
    %153 = vmatpush.msra.mxu0 %v130
    %154 = vmatpush.msra.mxu0 %v129
    %155 = vmatmul.f32.gmra.mxu0 %v137
    %v156 = vpop.f32.mrf.mxu0
    %v157 = vadd.f32 %v134, %v156
    %158 = vdwg.mxu0
    %v159 = vmul.f32 %v157, 0.5
    %v160 = vmul.f32 %v157, 0.70710677
    %v161 = vmul.f32 %v160, %v160
    %v162 = vmin.f32 16.0, %v161
    %v163 = vmul.f32 %v162, 2.1237322e-06
    %v164 = vadd.f32 %v163, 0.00028619796
    %v165 = vmul.f32 %v162, %v164
    %v166 = vadd.f32 %v165, 0.0036580483
    %v167 = vmul.f32 %v162, %v166
    %v168 = vadd.f32 %v167, 0.05243302
    %v169 = vmul.f32 %v162, %v168
    %v170 = vadd.f32 %v169, 0.18741608
    %v171 = vmul.f32 %v162, %v170
    %v172 = vadd.f32 %v171, 1.1283791
    %v173 = vmul.f32 %v160, %v172
    %v174 = vmul.f32 %v162, 3.8918573e-05
    %v175 = vadd.f32 %v174, 0.001143296
    %v176 = vmul.f32 %v162, %v175
    %v177 = vadd.f32 %v176, 0.014752088
    %v178 = vmul.f32 %v162, %v177
    %v179 = vadd.f32 %v178, 0.112945676
    %v180 = vmul.f32 %v162, %v179
    %v181 = vadd.f32 %v180, 0.4994258
    %v182 = vmul.f32 %v162, %v181
    %v183 = vadd.f32 %v182, 1.0
    %v184 = vrcp.pop %v183
    %v185 = vmul.f32 %v183, %v184
    %v186 = vsub.f32 1.0, %v185
    %v187 = vmul.f32 %v184, %v186
    %v188 = vadd.f32 %v184, %v187
    %vm189 = vweird.f32 %v183
    %vm190 = vweird.f32 %v184
    %vm191 = vmor %vm189, %vm190
    %v192 = vsel %vm191, %v184, %v188
    %v193 = vand.u32 2147483647, %v183
    %vm194 = vcmp.eq.f32.partialorder %v193, 8.507059e+37
    %v195 = vand.u32 %v183, 2147483648
    %v196 = vor.u32 1.1754944e-38, %v195
    %v197 = vsel %vm194, %v196, %v192
    %v198 = vmul.f32 %v173, %v197
    %v199 = vmin.f32 %v198, 1.0
    %v200 = vmax.f32 %v199, -1.0
    %v201 = vadd.f32 %v200, 1.0
    %v202 = vmul.f32 %v159, %v201
    %vm203 = vcmask 523264
    %v204 = vsel %vm203, %v202, 0.0
    %205 = vadd.xlane.f32.xlu0 %v204
    %v206 = vpop.xlane.xlu0 %205
    %v207 = vrcp.pop 64.0
    %v208 = vmul.f32 64.0, %v207
    %v209 = vsub.f32 1.0, %v208
    %v210 = vmul.f32 %v207, %v209
    %v211 = vadd.f32 %v207, %v210
    %vm212 = vweird.f32 %v207
    %v213 = vsel %vm212, %v207, %v211
    %v214 = vmul.f32 %v206, %v213
    %v215 = vsub.f32 %v202, %v214
    %v216 = vmul.f32 %v215, %v215
    %v217 = vsel %vm203, %v216, 0.0
    %218 = vadd.xlane.f32.xlu0 %v217
    %v219 = vpop.xlane.xlu0 %218
    %v220 = vmul.f32 %v219, %v213
    %v221 = vadd.f32 %v220, 1e-05
    %v222 = vrsqrt.pop %v221
    %v223 = vmul.f32 %v222, %v221
    %v224 = vmul.f32 %v223, %v222
    %v225 = vmul.f32 0.5, %v224
    %v226 = vsub.f32 1.5, %v225
    %v227 = vmul.f32 %v222, %v226
    %vm228 = vweird.f32 %v221
    %vm229 = vweird.f32 %v222
    %vm230 = vmor %vm228, %vm229
    %v231 = vsel %vm230, %v222, %v227
    %v232 = vmul.f32 %v215, %v231
    %v233 = vperm.slane %v133, 1
    %v234 = vmul.f32 %v232, %v233
    %236 = vrot.lane.b32.xlu0 %v233, 64
    %v237 = vpop.permute.xlu0 %236
    %v239 = vadd.f32 %v234, %v237
    %241 = vrot.lane.b32.xlu0 %v239, 64
    %v242 = vpop.permute.xlu0 %241
    %v244 = vadd.f32 %v157, %v242
    %v245 = vld [vmem:[#allocation8] sm:$0xff]
    %v246 = vld [vmem:[#allocation8 + $0x8] sm:$0xff]
    %v247 = vld [vmem:[#allocation8 + $0x10] sm:$0xff]
    %v248 = vld [vmem:[#allocation8 + $0x18] sm:$0xff]
    %v249 = vld [vmem:[#allocation8 + $0x20] sm:$0xff]
    %v250 = vld [vmem:[#allocation8 + $0x28] sm:$0xff]
    %v251 = vld [vmem:[#allocation8 + $0x30] sm:$0xff]
    %v252 = vld [vmem:[#allocation8 + $0x38] sm:$0xff]
    %v253 = vld [vmem:[#allocation10] sm:$0xff]
    %v254 = vperm.slane %v253, 0
    %256 = vrot.lane.b32.xlu0 %v244, 64
    %v257 = vpop.permute.xlu0 %256
    %v258 = vsel %vm203, %v257, 0
    %260 = vmatpush.msra.mxu0 0.0
    %261 = vmatpush.msra.mxu0 0.0
    %262 = vmatpush.msra.mxu0 0.0
    %263 = vmatpush.msra.mxu0 0.0
    %264 = vmatpush.msra.mxu0 0.0
    %265 = vmatpush.msra.mxu0 0.0
    %266 = vmatpush.msra.mxu0 0.0
    %267 = vmatpush.msra.mxu0 0.0
    %268 = vmatpush.msra.mxu0 %v252
    %269 = vmatpush.msra.mxu0 %v251
    %270 = vmatpush.msra.mxu0 %v250
    %271 = vmatpush.msra.mxu0 %v249
    %272 = vmatpush.msra.mxu0 %v248
    %273 = vmatpush.msra.mxu0 %v247
    %274 = vmatpush.msra.mxu0 %v246
    %275 = vmatpush.msra.mxu0 %v245
    %276 = vmatmul.f32.gmra.mxu0 %v258
    %v277 = vpop.f32.mrf.mxu0
    %v278 = vadd.f32 %v254, %v277
    %279 = vdwg.mxu0
    %v280 = vmul.f32 %v278, 0.5
    %v281 = vmul.f32 %v278, 0.70710677
    %v282 = vmul.f32 %v281, %v281
    %v283 = vmin.f32 16.0, %v282
    %v284 = vmul.f32 %v283, 2.1237322e-06
    %v285 = vadd.f32 %v284, 0.00028619796
    %v286 = vmul.f32 %v283, %v285
    %v287 = vadd.f32 %v286, 0.0036580483
    %v288 = vmul.f32 %v283, %v287
    %v289 = vadd.f32 %v288, 0.05243302
    %v290 = vmul.f32 %v283, %v289
    %v291 = vadd.f32 %v290, 0.18741608
    %v292 = vmul.f32 %v283, %v291
    %v293 = vadd.f32 %v292, 1.1283791
    %v294 = vmul.f32 %v281, %v293
    %v295 = vmul.f32 %v283, 3.8918573e-05
    %v296 = vadd.f32 %v295, 0.001143296
    %v297 = vmul.f32 %v283, %v296
    %v298 = vadd.f32 %v297, 0.014752088
    %v299 = vmul.f32 %v283, %v298
    %v300 = vadd.f32 %v299, 0.112945676
    %v301 = vmul.f32 %v283, %v300
    %v302 = vadd.f32 %v301, 0.4994258
    %v303 = vmul.f32 %v283, %v302
    %v304 = vadd.f32 %v303, 1.0
    %v305 = vrcp.pop %v304
    %v306 = vmul.f32 %v304, %v305
    %v307 = vsub.f32 1.0, %v306
    %v308 = vmul.f32 %v305, %v307
    %v309 = vadd.f32 %v305, %v308
    %vm310 = vweird.f32 %v304
    %vm311 = vweird.f32 %v305
    %vm312 = vmor %vm310, %vm311
    %v313 = vsel %vm312, %v305, %v309
    %v314 = vand.u32 2147483647, %v304
    %vm315 = vcmp.eq.f32.partialorder %v314, 8.507059e+37
    %v316 = vand.u32 %v304, 2147483648
    %v317 = vor.u32 1.1754944e-38, %v316
    %v318 = vsel %vm315, %v317, %v313
    %v319 = vmul.f32 %v294, %v318
    %v320 = vmin.f32 %v319, 1.0
    %v321 = vmax.f32 %v320, -1.0
    %v322 = vadd.f32 %v321, 1.0
    %v323 = vmul.f32 %v280, %v322
    %v324 = vsel %vm203, %v323, 0.0
    %325 = vadd.xlane.f32.xlu0 %v324
    %v326 = vpop.xlane.xlu0 %325
    %v327 = vmul.f32 %v326, %v213
    %v328 = vsub.f32 %v323, %v327
    %v329 = vmul.f32 %v328, %v328
    %v330 = vsel %vm203, %v329, 0.0
    %331 = vadd.xlane.f32.xlu0 %v330
    %v332 = vpop.xlane.xlu0 %331
    %v333 = vmul.f32 %v332, %v213
    %v334 = vadd.f32 %v333, 1e-05
    %v335 = vrsqrt.pop %v334
    %v336 = vmul.f32 %v335, %v334
    %v337 = vmul.f32 %v336, %v335
    %v338 = vmul.f32 0.5, %v337
    %v339 = vsub.f32 1.5, %v338
    %v340 = vmul.f32 %v335, %v339
    %vm341 = vweird.f32 %v334
    %vm342 = vweird.f32 %v335
    %vm343 = vmor %vm341, %vm342
    %v344 = vsel %vm343, %v335, %v340
    %v345 = vmul.f32 %v328, %v344
    %v346 = vperm.slane %v253, 1
    %v347 = vmul.f32 %v345, %v346
    %v348 = vperm.slane %v253, 2
    %v349 = vadd.f32 %v347, %v348
    %351 = vrot.lane.b32.xlu0 %v349, 64
    %v352 = vpop.permute.xlu0 %351
    %v354 = vadd.f32 %v244, %v352
    %v355 = vld [vmem:[#allocation11] sm:$0xff]
    %v356 = vld [vmem:[#allocation11 + $0x8] sm:$0xff]
    %v357 = vld [vmem:[#allocation11 + $0x10] sm:$0xff]
    %v358 = vld [vmem:[#allocation11 + $0x18] sm:$0xff]
    %v359 = vld [vmem:[#allocation11 + $0x20] sm:$0xff]
    %v360 = vld [vmem:[#allocation11 + $0x28] sm:$0xff]
    %v361 = vld [vmem:[#allocation11 + $0x30] sm:$0xff]
    %v362 = vld [vmem:[#allocation11 + $0x38] sm:$0xff]
    %v363 = vld [vmem:[#allocation13] sm:$0xff]
    %v364 = vperm.slane %v363, 0
    %366 = vrot.lane.b32.xlu0 %v354, 64
    %v367 = vpop.permute.xlu0 %366
    %v368 = vsel %vm203, %v367, 0
    %370 = vmatpush.msra.mxu0 0.0
    %371 = vmatpush.msra.mxu0 0.0
    %372 = vmatpush.msra.mxu0 0.0
    %373 = vmatpush.msra.mxu0 0.0
    %374 = vmatpush.msra.mxu0 0.0
    %375 = vmatpush.msra.mxu0 0.0
    %376 = vmatpush.msra.mxu0 0.0
    %377 = vmatpush.msra.mxu0 0.0
    %378 = vmatpush.msra.mxu0 %v362
    %379 = vmatpush.msra.mxu0 %v361
    %380 = vmatpush.msra.mxu0 %v360
    %381 = vmatpush.msra.mxu0 %v359
    %382 = vmatpush.msra.mxu0 %v358
    %383 = vmatpush.msra.mxu0 %v357
    %384 = vmatpush.msra.mxu0 %v356
    %385 = vmatpush.msra.mxu0 %v355
    %386 = vmatmul.f32.gmra.mxu0 %v368
    %v387 = vpop.f32.mrf.mxu0
    %v388 = vadd.f32 %v364, %v387
    %389 = vdwg.mxu0
    %390 = vst [vmem:[#allocation14] sm:$0xff] %v388
    // Predicated region
    $region58: #{tpu_custom_call.1} parent=1 // pred_check
      _
    $region59: #{tpu_custom_call.1} parent=1 // pred_check_branch
      %392 = sbr.rel (0) target = $region61
    $region60: #{tpu_custom_call.1} parent=1 // pred_region
      %394 = vsyncadd [#allocation4], 0
      %s396 = sshll.u32 [#allocation14], 4
      %s397 = int_to_ptr.vmem [resolvable:$true] %s396
      %s398 = sshll.u32 %s7, 4
      %s399 = int_to_ptr.hbm [resolvable:$true] %s398
      %401 = dma.vmem_to_hbm [thread:$0]  %s397, 128, %s399, [#allocation4]
    $region61: #{tpu_custom_call.1} parent=1 // pred_fallthru
      _
    // Predicated region
    $region62: #{tpu_custom_call.1} parent=1 // pred_check
      _
    $region63: #{tpu_custom_call.1} parent=1 // pred_check_branch
      %403 = sbr.rel (0) target = $region65
    $region64: #{tpu_custom_call.1} parent=1 // pred_region
      %405 = dma.done [#allocation4], 128
    $region65: #{tpu_custom_call.1} parent=1 // pred_fallthru
      _
    %406 = vsyncpa [#allocation3], 1
    %407 = vsyncpa [#allocation6], 1
    %408 = vsyncpa [#allocation9], 1
    %409 = vsyncpa [#allocation12], 1
    %410 = vsyncpa [#allocation4], 1

</llo_original>
